<compile_context>
chip_gen: v6e
topology: v6e:2x2x1
jax: 0.10.0
libtpu: 0.0.40
codegen_flags: <defaults>
</compile_context>

<pallas_src>
import functools

import jax
import jax.numpy as jnp
import numpy as np
from jax.experimental import pallas as pl
from jax.experimental.pallas import tpu as pltpu


_MASK_PAD = -1e30  # finite "minus infinity" for padded keys (no exp(NaN) risk)


def _round_up(x, m):
    return ((x + m - 1) // m) * m


def _vmem_capacity_bytes():
    """Physical VMEM of the local TPU generation (fallback: v7x's 64 MiB)."""
    try:
        fn = getattr(pltpu, "get_tpu_info", None)
        if fn is not None:
            cap = getattr(fn(), "vmem_capacity_bytes", None)
            if cap:
                return int(cap)
    except Exception:
        pass
    return 64 * 1024 * 1024


def _attn_step_vmem(tq, tk, hd, mask_bytes, dt_bytes):
    """Per-step VMEM estimate for the attention kernel: double-buffered
    q/k/v/mask/out tiles + f32 scratch, using lane/sublane-padded extents."""
    hd_p = _round_up(hd, 128)
    tk_p = _round_up(tk, 128)
    tq_p = _round_up(tq, 8)
    q = 2 * tq_p * hd_p * dt_bytes
    kv = 2 * 2 * tk_p * hd_p * dt_bytes
    msk = 2 * tq_p * tk_p * mask_bytes
    out = 2 * tq_p * hd_p * dt_bytes
    scr = tq_p * (hd_p + 2 * 128) * 4
    return q + kv + msk + out + scr


def _choose_tiles(Lq, Lk, hd, mask_bytes, dt_bytes, budget_bytes):
    """Budget-aware (tq, tk): one sublane-aligned q tile for short queries
    (256 rows otherwise); tk = largest of {1024,512,256,128} (capped near Lk)
    whose per-step VMEM estimate fits the generation's budget."""
    tq = _round_up(Lq, 8) if Lq <= 512 else 256
    if Lk <= 128:
        return tq, Lk                      # single kv tile, lane dim == full Lk
    tk_cap = min(1024, _round_up(Lk, 128))
    tk = 128
    for cand in (1024, 512, 256, 128):
        if cand <= tk_cap and _attn_step_vmem(tq, cand, hd,
                                              mask_bytes, dt_bytes) <= budget_bytes:
            tk = cand
            break
    return tq, tk


# ----------------------------------------------------------------------------
# Kernels
# ----------------------------------------------------------------------------
def _head_proj_kernel(x_ref, w_ref, o_ref, *, mxu_dtype):
    """(tl, H) @ (H, hd) -> one head's projected tile per grid step."""
    x = x_ref[0].astype(mxu_dtype)
    o_ref[0, 0] = jnp.dot(x, w_ref[0],
                          preferred_element_type=jnp.float32).astype(o_ref.dtype)


def _flash_attn_kernel(q_ref, k_ref, v_ref, mask_ref, o_ref,
                       m_sc, l_sc, acc_sc, *, mxu_dtype):
    """Grid = (batch, head, q_tile, kv_tile); online softmax over kv tiles."""
    ki = pl.program_id(3)
    nk = pl.num_programs(3)

    @pl.when(ki == 0)
    def _():
        m_sc[...] = jnp.full_like(m_sc, -jnp.inf)
        l_sc[...] = jnp.zeros_like(l_sc)
        acc_sc[...] = jnp.zeros_like(acc_sc)

    q = q_ref[0, 0]                                   # (tq, hd), pre-scaled, bf16
    k = k_ref[0, 0]                                   # (tk, hd)
    v = v_ref[0, 0]                                   # (tk, hd)

    s = jnp.einsum("qd,kd->qk", q, k, preferred_element_type=jnp.float32)
    s = s + mask_ref[0].astype(jnp.float32)           # additive mask, f32

    m_prev = m_sc[...]
    m_new = jnp.maximum(m_prev, jnp.max(s, axis=-1, keepdims=True))
    alpha = jnp.exp(m_prev - m_new)                   # f32 softmax stats (v5e-safe)
    p = jnp.exp(s - m_new)
    l_sc[...] = alpha * l_sc[...] + jnp.sum(p, axis=-1, keepdims=True)
    acc_sc[...] = alpha * acc_sc[...] + jnp.dot(
        p.astype(mxu_dtype), v, preferred_element_type=jnp.float32)
    m_sc[...] = m_new

    @pl.when(ki == nk - 1)
    def _():
        o_ref[0, 0] = (acc_sc[...] *
                       pl.reciprocal(l_sc[...], approx=True)).astype(o_ref.dtype)


def _out_proj_kernel(a_ref, w_ref, o_ref, acc_sc):
    """Accumulate per-head (tq, hd) @ (hd, H) into one lane-dense (tq, H) store."""
    h = pl.program_id(2)
    nh = pl.num_programs(2)

    @pl.when(h == 0)
    def _():
        acc_sc[...] = jnp.zeros_like(acc_sc)

    acc_sc[...] += jnp.dot(a_ref[0, 0], w_ref[0],
                           preferred_element_type=jnp.float32)

    @pl.when(h == nh - 1)
    def _():
        o_ref[0] = acc_sc[...].astype(o_ref.dtype)


# ----------------------------------------------------------------------------
# Host-side wrappers
# ----------------------------------------------------------------------------
def prepare_cross_attention_weights(wq, wk, wv, wo, *, num_heads,
                                    mxu_dtype=jnp.bfloat16):
    """One-time weight re-layout (cache at model init, not per forward):
    PyTorch Linear [out, in] -> head-major [in, out] tiles, 1/sqrt(hd) folded
    into Wq, cast to the MXU compute dtype."""
    H = wq.shape[0]
    assert H % num_heads == 0
    hd = H // num_heads
    scale = float(hd) ** -0.5

    def to_heads(w):                                  # (H_out, H_in) -> (nh, H_in, hd)
        return jnp.transpose(w.T.reshape(H, num_heads, hd), (1, 0, 2))

    wq_h = (to_heads(wq.astype(jnp.float32)) * scale).astype(mxu_dtype)
    wk_h = to_heads(wk).astype(mxu_dtype)
    wv_h = to_heads(wv).astype(mxu_dtype)
    wo_h = wo.T.reshape(num_heads, hd, H).astype(mxu_dtype)
    return wq_h, wk_h, wv_h, wo_h


def multi_head_cross_attention(query, key, value, attention_mask,
                               prepared_weights, *, num_heads,
                               mxu_dtype=jnp.bfloat16):
    """query [B, Lq, H]; key/value [B, Lk, H]; attention_mask [B, Lq, Lk]
    (finite additive) or None. Returns [B, Lq, H] in query.dtype."""
    wq_h, wk_h, wv_h, wo_h = prepared_weights
    B, Lq, H = query.shape
    Lk = key.shape[1]
    nh = num_heads
    hd = H // nh
    out_dtype = query.dtype
    dt_bytes = jnp.dtype(mxu_dtype).itemsize

    if attention_mask is None:
        # TODO(synk): maskless fast path that skips the mask stream entirely.
        attention_mask = jnp.zeros((B, Lq, Lk), dtype=jnp.float32)
    mask_bytes = jnp.dtype(attention_mask.dtype).itemsize

    # ---- per-generation VMEM budget -> tile sizes -> padded extents --------
    vmem_cap = _vmem_capacity_bytes()                     # 64 MiB (v7x) .. 128 MiB
    vmem_limit = int(min(0.85 * vmem_cap, 110 * 2**20))   # leave compiler headroom
    tq, tk = _choose_tiles(Lq, Lk, hd, mask_bytes, dt_bytes, vmem_limit // 2)
    Lq_p = _round_up(Lq, tq)
    Lk_p = _round_up(Lk, tk)

    def pad_rows(x, L_target):
        pad = L_target - x.shape[1]
        return x if pad == 0 else jnp.pad(x, ((0, 0), (0, pad), (0, 0)))

    q_in = pad_rows(query, Lq_p)
    k_in = pad_rows(key, Lk_p)
    v_in = pad_rows(value, Lk_p)

    mask_p = attention_mask
    if Lk_p != Lk:                                        # padded keys -> masked out
        mask_p = jnp.pad(mask_p, ((0, 0), (0, 0), (0, Lk_p - Lk)),
                         constant_values=_MASK_PAD)
    if Lq_p != Lq:                                        # padded queries -> discarded
        mask_p = jnp.pad(mask_p, ((0, 0), (0, Lq_p - Lq), (0, 0)))

    def cparams(sem):
        return pltpu.CompilerParams(dimension_semantics=sem,
                                    vmem_limit_bytes=vmem_limit)

    # ---- pre-pass: Q/K/V projections into head-major (B, nh, L, hd) --------
    def project(x, w_h, tl):
        Bx, Lx, _ = x.shape
        return pl.pallas_call(
            functools.partial(_head_proj_kernel, mxu_dtype=mxu_dtype),
            out_shape=jax.ShapeDtypeStruct((Bx, nh, Lx, hd), mxu_dtype),
            grid_spec=pltpu.PrefetchScalarGridSpec(
                num_scalar_prefetch=0,
                grid=(Bx, Lx // tl, nh),          # h innermost: x tile DMA'd once
                in_specs=[
                    pl.BlockSpec((1, tl, H), lambda b, li, h: (b, li, 0)),
                    pl.BlockSpec((1, H, hd), lambda b, li, h: (h, 0, 0)),
                ],
                out_specs=pl.BlockSpec((1, 1, tl, hd),
                                       lambda b, li, h: (b, h, li, 0)),
            ),
            compiler_params=cparams(("parallel", "parallel", "parallel")),
        )(x, w_h)

    tl_kv = tk if tk <= 512 else 512                      # always divides Lk_p
    q_h = project(q_in, wq_h, tq)                         # scale folded into wq_h
    k_h = project(k_in, wk_h, tl_kv)
    v_h = project(v_in, wv_h, tl_kv)

    # ---- flash attention: per-head output, head axis "parallel" ------------
    attn = pl.pallas_call(
        functools.partial(_flash_attn_kernel, mxu_dtype=mxu_dtype),
        out_shape=jax.ShapeDtypeStruct((B, nh, Lq_p, hd), mxu_dtype),
        grid_spec=pltpu.PrefetchScalarGridSpec(
            num_scalar_prefetch=0,
            grid=(B, nh, Lq_p // tq, Lk_p // tk),
            in_specs=[
                pl.BlockSpec((1, 1, tq, hd), lambda b, h, qi, ki: (b, h, qi, 0)),
                pl.BlockSpec((1, 1, tk, hd), lambda b, h, qi, ki: (b, h, ki, 0)),
                pl.BlockSpec((1, 1, tk, hd), lambda b, h, qi, ki: (b, h, ki, 0)),
                pl.BlockSpec((1, tq, tk),    lambda b, h, qi, ki: (b, qi, ki)),
            ],
            out_specs=pl.BlockSpec((1, 1, tq, hd),
                                   lambda b, h, qi, ki: (b, h, qi, 0)),
            scratch_shapes=[
                pltpu.VMEM((tq, 1), jnp.float32),     # running max (f32)
                pltpu.VMEM((tq, 1), jnp.float32),     # running denominator (f32)
                pltpu.VMEM((tq, hd), jnp.float32),    # P@V accumulator (f32)
            ],
        ),
        compiler_params=cparams(("parallel", "parallel", "parallel", "arbitrary")),
    )(q_h, k_h, v_h, mask_p)

    # ---- output projection: accumulate heads, lane-dense (tq, H) store -----
    out = pl.pallas_call(
        _out_proj_kernel,
        out_shape=jax.ShapeDtypeStruct((B, Lq_p, H), out_dtype),
        grid_spec=pltpu.PrefetchScalarGridSpec(
            num_scalar_prefetch=0,
            grid=(B, Lq_p // tq, nh),
            in_specs=[
                pl.BlockSpec((1, 1, tq, hd), lambda b, qi, h: (b, h, qi, 0)),
                pl.BlockSpec((1, hd, H),     lambda b, qi, h: (h, 0, 0)),
            ],
            out_specs=pl.BlockSpec((1, tq, H), lambda b, qi, h: (b, qi, 0)),
            scratch_shapes=[pltpu.VMEM((tq, H), jnp.float32)],
        ),
        compiler_params=cparams(("parallel", "parallel", "arbitrary")),
    )(attn, wo_h)

    return out[:, :Lq, :] if Lq_p != Lq else out


# ----------------------------------------------------------------------------
# Reference + test
# ----------------------------------------------------------------------------
def _reference(query, key, value, mask, wq, wk, wv, wo, num_heads):
    B, Lq, H = query.shape
    Lk = key.shape[1]
    hd = H // num_heads
    scale = float(hd) ** -0.5
    q = (query @ wq.T).reshape(B, Lq, num_heads, hd).transpose(0, 2, 1, 3)
    k = (key @ wk.T).reshape(B, Lk, num_heads, hd).transpose(0, 2, 1, 3)
    v = (value @ wv.T).reshape(B, Lk, num_heads, hd).transpose(0, 2, 1, 3)
    s = jnp.einsum("bhqd,bhkd->bhqk", q, k) * scale + mask[:, None, :, :]
    p = jax.nn.softmax(s, axis=-1)
    o = jnp.einsum("bhqk,bhkd->bhqd", p, v).transpose(0, 2, 1, 3).reshape(B, Lq, H)
    return o @ wo.T


if __name__ == "__main__":
    B, Lq, Lk = 2, 12, 24            # Lq=12 exercises the pad-to-tile + slice path
    hidden_size, num_heads = 32, 4

    root = jax.random.PRNGKey(0)
    kq, kk, kv, km, k1, k2, k3, k4 = jax.random.split(root, 8)

    query = jax.random.normal(kq, (B, Lq, hidden_size), dtype=jnp.float32)
    key_s = jax.random.normal(kk, (B, Lk, hidden_size), dtype=jnp.float32)
    value = jax.random.normal(kv, (B, Lk, hidden_size), dtype=jnp.float32)
    mask_bits = jax.random.bernoulli(km, p=0.1, shape=(B, Lq, Lk))
    attention_mask = jnp.where(mask_bits, -1e9, 0.0).astype(jnp.float32)

    bound = 1.0 / np.sqrt(hidden_size)
    wq = jax.random.uniform(k1, (hidden_size, hidden_size), jnp.float32, -bound, bound)
    wk = jax.random.uniform(k2, (hidden_size, hidden_size), jnp.float32, -bound, bound)
    wv = jax.random.uniform(k3, (hidden_size, hidden_size), jnp.float32, -bound, bound)
    wo = jax.random.uniform(k4, (hidden_size, hidden_size), jnp.float32, -bound, bound)

    # One-time weight prep (cache at model init in real use).
    prepared = prepare_cross_attention_weights(wq, wk, wv, wo, num_heads=num_heads)

    out = multi_head_cross_attention(query, key_s, value, attention_mask,
                                     prepared, num_heads=num_heads)
    out = jax.block_until_ready(out)
    assert out.shape == (B, Lq, hidden_size) and out.dtype == query.dtype

    ref = _reference(query, key_s, value, attention_mask, wq, wk, wv, wo, num_heads)
    # bf16 MXU operands + online softmax + approx reciprocal -> looser parity
    # than a pure-f32 path (pass mxu_dtype=jnp.float32 for tighter agreement).
    np.testing.assert_allclose(np.asarray(out), np.asarray(ref),
                               rtol=2e-2, atol=2e-2)

    print("KERNEL_OK")
</pallas_src>

<mosaic_0001>
module attributes {stable_mosaic.version = 11 : i64} {
  func.func @_head_proj_kernel(%arg0: i32, %arg1: i32, %arg2: i32, %arg3: memref<1x16x32xf32, #tpu.memory_space<vmem>>, %arg4: memref<1x32x8xbf16, #tpu.memory_space<vmem>>, %arg5: memref<1x1x16x8xbf16, #tpu.memory_space<vmem>>) attributes {dimension_semantics = [#tpu.dimension_semantics<parallel>, #tpu.dimension_semantics<parallel>, #tpu.dimension_semantics<parallel>], iteration_bounds = array<i64: 2, 1, 4>, scalar_prefetch = 0 : i64, scratch_operands = 0 : i64, tpu.core_type = #tpu.core_type<tc>, window_params = [{transform_indices = @transform_0, window_bounds = array<i64: 1, 16, 32>}, {transform_indices = @transform_1, window_bounds = array<i64: 1, 32, 8>}, {transform_indices = @transform_2, window_bounds = array<i64: 1, 1, 16, 8>}]} {
    %c0 = arith.constant 0 : index
    %c0_0 = arith.constant 0 : index
    %c0_1 = arith.constant 0 : index
    %0 = vector.load %arg3[%c0, %c0_0, %c0_1] : memref<1x16x32xf32, #tpu.memory_space<vmem>>, vector<1x16x32xf32>
    %1 = vector.shape_cast %0 : vector<1x16x32xf32> to vector<16x32xf32>
    %2 = arith.truncf %1 : vector<16x32xf32> to vector<16x32xbf16>
    %c0_2 = arith.constant 0 : index
    %c0_3 = arith.constant 0 : index
    %c0_4 = arith.constant 0 : index
    %3 = vector.load %arg4[%c0_2, %c0_3, %c0_4] : memref<1x32x8xbf16, #tpu.memory_space<vmem>>, vector<1x32x8xbf16>
    %4 = vector.shape_cast %3 : vector<1x32x8xbf16> to vector<32x8xbf16>
    %cst = arith.constant dense<0.000000e+00> : vector<16x8xf32>
    %5 = tpu.matmul %2, %4, %cst {dimension_numbers = #tpu.dot_dimension_numbers<[1], [0], [0], [1], [0, 0, 1, 1], [], []>} : vector<16x32xbf16>, vector<32x8xbf16>, vector<16x8xf32> -> vector<16x8xf32>
    %6 = arith.truncf %5 : vector<16x8xf32> to vector<16x8xbf16>
    %c0_5 = arith.constant 0 : index
    %c0_6 = arith.constant 0 : index
    %c0_7 = arith.constant 0 : index
    %c0_8 = arith.constant 0 : index
    %7 = vector.load %arg5[%c0_5, %c0_6, %c0_7, %c0_8] : memref<1x1x16x8xbf16, #tpu.memory_space<vmem>>, vector<1x1x16x8xbf16>
    %8 = vector.shape_cast %7 : vector<1x1x16x8xbf16> to vector<16x8xbf16>
    %9 = vector.shape_cast %6 : vector<16x8xbf16> to vector<1x1x16x8xbf16>
    tpu.vector_store %arg5[%c0_5, %c0_6, %c0_7, %c0_8], %9 {strides = array<i32>} : memref<1x1x16x8xbf16, #tpu.memory_space<vmem>>, vector<1x1x16x8xbf16>,
    return
  }
  func.func @transform_0(%arg0: i32, %arg1: i32, %arg2: i32) -> (i32, i32, i32) {
    %c0_i32 = arith.constant 0 : i32
    %c0_i32_0 = arith.constant 0 : i32
    return %arg0, %arg1, %c0_i32 : i32, i32, i32
  }
  func.func @transform_1(%arg0: i32, %arg1: i32, %arg2: i32) -> (i32, i32, i32) {
    %c0_i32 = arith.constant 0 : i32
    %c0_i32_0 = arith.constant 0 : i32
    %c0_i32_1 = arith.constant 0 : i32
    return %arg2, %c0_i32, %c0_i32_0 : i32, i32, i32
  }
  func.func @transform_2(%arg0: i32, %arg1: i32, %arg2: i32) -> (i32, i32, i32, i32) {
    %c0_i32 = arith.constant 0 : i32
    %c0_i32_0 = arith.constant 0 : i32
    return %arg0, %arg2, %arg1, %c0_i32 : i32, i32, i32, i32
  }
}

</mosaic_0001>

<llo_original>
// kernel: tpu_custom_call.1
$region0: #{tpu_custom_call.1}
  #allocation0 [shape = 'u32[]', space=smem, size = 0x4, offset = 0x4, fixed_abs, tag = 'smem constant byte address 0x4 - core index']
  #allocation1 [shape = 'u32[144,128]{1,0:T(1,128)}', space=vmem, size = 0x12000, scoped, tag = 'internal scratch']
  %s0 = inlined_call_operand.vmem [shape: f32[2,16,32], index: 0, kind: input, shape index: {}]
  %s1 = inlined_call_operand.vmem [shape: bf16[4,32,8], index: 1, kind: input, shape index: {}]
  %s2 = inlined_call_operand.vmem [shape: bf16[2,4,16,8], index: 2, kind: output, shape index: {}]
  %s3 = sld [smem:[#allocation0]]
  $region41: #{tpu_custom_call.1} parent=0
    _
  %s5 = ssub.s32 1, %s3
  %s6 = scalar_select 0, %s5, %s3
  loop: start=0, step=1, limit=10
  $region2: #{tpu_custom_call.1} parent=0 // loop_pre_header
    _
  $region3: #{tpu_custom_call.1} parent=0 // loop_header
    %s8 = sphi 0, %s12
    %p9 = scmp.ge.s32.totalorder %s8, 10
    %s15 = sphi 0, %s34
    %s16 = sphi 0, %s30
    %s17 = sphi 0, %s26
    %s18 = sphi 0, %s15
    %s19 = sphi 0, %s16
    %s20 = sphi 0, %s17
    %s21 = sphi 0, %s18
    %s22 = sphi 0, %s19
    %s23 = sphi 0, %s20
    %s39 = sphi 0, %s41
    %s42 = sphi 0, %s39
    %s43 = sphi 0, %s42
    %s59 = sphi 0, %s43
    %s65 = sphi 0, %s67
    %s68 = sphi 0, %s65
    %s69 = sphi 0, %s68
    %s85 = sphi 0, %s69
    %s95 = sphi 0, %s97
    %s98 = sphi 0, %s95
    %s99 = sphi 0, %s98
    %s115 = sphi 0, %s99
  $region4: #{tpu_custom_call.1} parent=0 // loop_header_branch
    %11 = sbr.rel (%p9) target = $region8
  $region5: #{tpu_custom_call.1} parent=0 // loop_body
    %s13 = ssub.s32 %s8, 1
    %s14 = ssub.s32 %s8, 2
    %s24 = sadd.s32 1, %s17
    %p25 = scmp.ge.s32.totalorder %s24, 4
    %s26 = scalar_select %p25, 0, %s24
    %s27 = sadd.s32 1, %s16
    %s28 = scalar_select %p25, %s27, %s16
    %p29 = scmp.ge.s32.totalorder %s28, 1
    %s30 = scalar_select %p29, 0, %s28
    %s31 = sadd.s32 1, %s15
    %s32 = scalar_select %p29, %s31, %s15
    %p33 = scmp.ge.s32.totalorder %s32, 2
    %s34 = scalar_select %p33, 0, %s32
    %s35 = ssub.s32 %s15, %s34
    %s36 = ssub.s32 %s16, %s30
    %s37 = sor.u32 %s35, %s36
    %p38 = scmp.eq.s32.totalorder %s37, 0
    %s40 = sadd.s32 %s39, 1
    %s41 = scalar_select %p38, %s39, %s40
    %p44 = pneg %p38
    %p45 = scmp.eq.s32.totalorder %s8, 7
    %p46 = por %p44, %p45
    %p47 = scmp.ne.s32.totalorder %s39, %s42
    %p48 = scmp.eq.s32.totalorder %s8, 0
    %p49 = por %p47, %p48
    %p50 = scmp.ne.s32.totalorder %s39, %s42
    %p51 = scmp.eq.s32.totalorder %s13, 7
    %p52 = por %p50, %p51
    %p53 = scmp.ne.s32.totalorder %s42, %s43
    %p54 = scmp.eq.s32.totalorder %s13, 0
    %p55 = por %p53, %p54
    %p56 = scmp.ne.s32.totalorder %s42, %s43
    %p57 = scmp.eq.s32.totalorder %s14, 7
    %p58 = por %p56, %p57
    %p60 = scmp.ne.s32.totalorder %s43, %s59
    %p61 = scmp.eq.s32.totalorder %s14, 0
    %p62 = por %p60, %p61
    %s63 = ssub.s32 %s17, %s26
    %p64 = scmp.eq.s32.totalorder %s63, 0
    %s66 = sadd.s32 %s65, 1
    %s67 = scalar_select %p64, %s65, %s66
    %p70 = pneg %p64
    %p71 = scmp.eq.s32.totalorder %s8, 7
    %p72 = por %p70, %p71
    %p73 = scmp.ne.s32.totalorder %s65, %s68
    %p74 = scmp.eq.s32.totalorder %s8, 0
    %p75 = por %p73, %p74
    %p76 = scmp.ne.s32.totalorder %s65, %s68
    %p77 = scmp.eq.s32.totalorder %s13, 7
    %p78 = por %p76, %p77
    %p79 = scmp.ne.s32.totalorder %s68, %s69
    %p80 = scmp.eq.s32.totalorder %s13, 0
    %p81 = por %p79, %p80
    %p82 = scmp.ne.s32.totalorder %s68, %s69
    %p83 = scmp.eq.s32.totalorder %s14, 7
    %p84 = por %p82, %p83
    %p86 = scmp.ne.s32.totalorder %s69, %s85
    %p87 = scmp.eq.s32.totalorder %s14, 0
    %p88 = por %p86, %p87
    %s89 = ssub.s32 %s15, %s34
    %s90 = ssub.s32 %s17, %s26
    %s91 = sor.u32 %s89, %s90
    %s92 = ssub.s32 %s16, %s30
    %s93 = sor.u32 %s91, %s92
    %p94 = scmp.eq.s32.totalorder %s93, 0
    %s96 = sadd.s32 %s95, 1
    %s97 = scalar_select %p94, %s95, %s96
    %p100 = pneg %p94
    %p101 = scmp.eq.s32.totalorder %s8, 7
    %p102 = por %p100, %p101
    %p103 = scmp.ne.s32.totalorder %s95, %s98
    %p104 = scmp.eq.s32.totalorder %s8, 0
    %p105 = por %p103, %p104
    %p106 = scmp.ne.s32.totalorder %s95, %s98
    %p107 = scmp.eq.s32.totalorder %s13, 7
    %p108 = por %p106, %p107
    %p109 = scmp.ne.s32.totalorder %s98, %s99
    %p110 = scmp.eq.s32.totalorder %s13, 0
    %p111 = por %p109, %p110
    %p112 = scmp.ne.s32.totalorder %s98, %s99
    %p113 = scmp.eq.s32.totalorder %s14, 7
    %p114 = por %p112, %p113
    %p116 = scmp.ne.s32.totalorder %s99, %s115
    %p117 = scmp.eq.s32.totalorder %s14, 0
    %p118 = por %p116, %p117
    %p119 = scmp.le.s32.totalorder 1, %s8
    %p120 = scmp.lt.s32.totalorder %s8, 9
    %p121 = pnand %p119, %p120
    %p122 = pneg %p121
    // Predicated region
    $region9: #{tpu_custom_call.1} parent=5 // pred_check
      _
    $region10: #{tpu_custom_call.1} parent=5 // pred_check_branch
      %124 = sbr.rel (%p121) target = $region12
    $region11: #{tpu_custom_call.1} parent=5 // pred_region
      %s125 = ssub.s32 %s8, 1
    $region12: #{tpu_custom_call.1} parent=5 // pred_fallthru
      _
    %p126 = scmp.lt.s32.totalorder %s8, 8
    // Predicated region
    $region13: #{tpu_custom_call.1} parent=5 // pred_check
      %p127 = pneg %p126
    $region14: #{tpu_custom_call.1} parent=5 // pred_check_branch
      %129 = sbr.rel (%p127) target = $region16
    $region15: #{tpu_custom_call.1} parent=5 // pred_region
      // Predicated region
      $region17: #{tpu_custom_call.1} parent=15 // pred_check
        %p130 = pneg %p49
      $region18: #{tpu_custom_call.1} parent=15 // pred_check_branch
        %132 = sbr.rel (%p130) target = $region20
      $region19: #{tpu_custom_call.1} parent=15 // pred_region
        %s133 = smul.u32 2, %s16
        %p134 = scmp.lt.s32.totalorder %s15, 1
        %s135 = scalar_select %p134, %s15, 1
        %p136 = scmp.lt.s32.totalorder %s133, 1
        %s137 = scalar_select %p136, %s133, 1
        %s138 = smul.addr %s135, 2
        %s139 = sadd.s32 %s137, %s138
        %s140 = smul.addr %s139, 8
        %s141 = scalar_lea.vmem %s0, %s140
        %s142 = smul.u32 2, %s16
      $region20: #{tpu_custom_call.1} parent=15 // pred_fallthru
        _
      // Predicated region
      $region21: #{tpu_custom_call.1} parent=15 // pred_check
        %p143 = pneg %p75
      $region22: #{tpu_custom_call.1} parent=15 // pred_check_branch
        %145 = sbr.rel (%p143) target = $region24
      $region23: #{tpu_custom_call.1} parent=15 // pred_region
        %p146 = scmp.lt.s32.totalorder %s17, 3
        %s147 = scalar_select %p146, %s17, 3
        %s148 = smul.addr %s147, 4
        %s149 = smul.addr %s148, 4
        %s150 = scalar_lea.vmem %s1, %s149
      $region24: #{tpu_custom_call.1} parent=15 // pred_fallthru
        _
    $region16: #{tpu_custom_call.1} parent=5 // pred_fallthru
      _
    %p151 = scmp.le.s32.totalorder 1, %s8
    %p152 = scmp.lt.s32.totalorder %s8, 9
    %p153 = pnand %p151, %p152
    %p154 = pneg %p153
    // Predicated region
    $region25: #{tpu_custom_call.1} parent=5 // pred_check
      _
    $region26: #{tpu_custom_call.1} parent=5 // pred_check_branch
      %156 = sbr.rel (%p153) target = $region28
    $region27: #{tpu_custom_call.1} parent=5 // pred_region
      %s157 = ssub.s32 %s8, 1
      %s158 = smul.u32 2, %s19
      %p159 = scmp.lt.s32.totalorder %s18, 1
      %s160 = scalar_select %p159, %s18, 1
      %p161 = scmp.lt.s32.totalorder %s158, 1
      %s162 = scalar_select %p161, %s158, 1
      %s163 = smul.addr %s160, 2
      %s164 = sadd.s32 %s162, %s163
      %s165 = smul.addr %s164, 8
      %s166 = scalar_lea.vmem %s0, %s165
      %p167 = pneg %p55
      %p168 = pneg %p52
      %p169 = scmp.lt.s32.totalorder %s20, 3
      %s170 = scalar_select %p169, %s20, 3
      %s171 = smul.addr %s170, 4
      %s172 = smul.addr %s171, 4
      %s173 = scalar_lea.vmem %s1, %s172
      %p174 = pneg %p81
      %p175 = pneg %p78
      %p176 = pneg %p111
      %p177 = pneg %p108
      %s178 = smul.u32 2, %s19
      %p179 = scmp.lt.s32.totalorder %s18, 1
      %s180 = scalar_select %p179, %s18, 1
      %p181 = scmp.lt.s32.totalorder %s20, 3
      %s182 = scalar_select %p181, %s20, 3
      %p183 = scmp.lt.s32.totalorder %s178, 1
      %s184 = scalar_select %p183, %s178, 1
      %s185 = smul.addr %s182, 2
      %s186 = sadd.s32 %s184, %s185
      %s187 = smul.addr %s180, 8
      %s188 = sadd.s32 %s186, %s187
      %s189 = smul.addr %s188, 4
      %s190 = scalar_lea.vmem %s2, %s189
      %s191 = smul.u32 2, %s19
      %p192 = scmp.lt.s32.totalorder %s18, 1
      %s193 = scalar_select %p192, %s18, 1
      %p194 = scmp.lt.s32.totalorder %s191, 1
      %s195 = scalar_select %p194, %s191, 1
      %s196 = smul.addr %s193, 2
      %s197 = sadd.s32 %s195, %s196
      %s198 = smul.addr %s197, 8
      %s199 = scalar_lea.vmem %s0, %s198
      %s200 = smul.u32 2, %s19
      %p201 = scmp.lt.s32.totalorder %s20, 3
      %s202 = scalar_select %p201, %s20, 3
      %s203 = smul.addr %s202, 4
      %s204 = smul.addr %s203, 4
      %s205 = scalar_lea.vmem %s1, %s204
      %s206 = smul.u32 2, %s19
      %p207 = scmp.lt.s32.totalorder %s18, 1
      %s208 = scalar_select %p207, %s18, 1
      %p209 = scmp.lt.s32.totalorder %s20, 3
      %s210 = scalar_select %p209, %s20, 3
      %p211 = scmp.lt.s32.totalorder %s206, 1
      %s212 = scalar_select %p211, %s206, 1
      %s213 = smul.addr %s210, 2
      %s214 = sadd.s32 %s212, %s213
      %s215 = smul.addr %s208, 8
      %s216 = sadd.s32 %s214, %s215
      %s217 = smul.addr %s216, 4
      %s218 = scalar_lea.vmem %s2, %s217
      %s219 = smul.u32 2, %s19
      %v221 = vld [vmem:[%s199] sm:$0xff]
      %v222 = vld [vmem:[%s199 + $0x8] sm:$0xff]
      %v223 = vpack.c.bf16 %v222, %v221
      %v224 = vld [vmem:[%s205] sm:$0xf]
      %v225 = vld [vmem:[%s205 + $0x4] sm:$0xf]
      %v226 = vld [vmem:[%s205 + $0x8] sm:$0xf]
      %v227 = vld [vmem:[%s205 + $0xc] sm:$0xf]
      %v232 = vunpack.c.l.b16 %v224
      %v233 = vunpack.c.l.b16 %v225
      %v234 = vunpack.c.l.b16 %v226
      %v235 = vunpack.c.l.b16 %v227
      %v236 = vpack.c.b16 %v233, %v232
      %v237 = vpack.c.b16 %v235, %v234
      %vm240 = vcmask 261120
      %v242 = vsel %vm240, %v223, 0
      %244 = vmatprep.subr.bf16.mxu0 0
      %245 = vmatpush1.bf16.msra.mxu0 0
      %246 = vmatprep.subr.bf16.mxu0 0
      %247 = vmatpush1.bf16.msra.mxu0 0
      %248 = vmatprep.subr.bf16.mxu0 0
      %249 = vmatpush1.bf16.msra.mxu0 0
      %250 = vmatprep.subr.bf16.mxu0 0
      %251 = vmatpush1.bf16.msra.mxu0 0
      %252 = vmatprep.subr.bf16.mxu0 0
      %253 = vmatpush1.bf16.msra.mxu0 0
      %254 = vmatprep.subr.bf16.mxu0 0
      %255 = vmatpush1.bf16.msra.mxu0 0
      %256 = vmatprep.subr.bf16.mxu0 0
      %257 = vmatpush1.bf16.msra.mxu0 %v237
      %258 = vmatprep.subr.bf16.mxu0 0
      %259 = vmatpush1.bf16.msra.mxu0 %v236
      %260 = vmatprep.subr.bf16.mxu0 0
      %261 = vmatpush2.bf16.msra.mxu0 0
      %262 = vmatprep.subr.bf16.mxu0 0
      %263 = vmatpush2.bf16.msra.mxu0 0
      %264 = vmatprep.subr.bf16.mxu0 0
      %265 = vmatpush2.bf16.msra.mxu0 0
      %266 = vmatprep.subr.bf16.mxu0 0
      %267 = vmatpush2.bf16.msra.mxu0 0
      %268 = vmatprep.subr.bf16.mxu0 0
      %269 = vmatpush2.bf16.msra.mxu0 0
      %270 = vmatprep.subr.bf16.mxu0 0
      %271 = vmatpush2.bf16.msra.mxu0 0
      %272 = vmatprep.subr.bf16.mxu0 0
      %273 = vmatpush2.bf16.msra.mxu0 0
      %274 = vmatprep.subr.bf16.mxu0 0
      %275 = vmatpush2.bf16.msra.mxu0 0
      %276 = vmatprep.mubr.bf16.mxu0 0
      %277 = vmatmul.mubr.bf16.gmra.mxu0 %v242
      %v278 = vpop.f32.mrf.mxu0
      %v279 = vadd.f32 0.0, %v278
      %v280 = vpop.f32.mrf.mxu0
      %v281 = vpop.f32.mrf.mxu0
      %v282 = vadd.f32 0.0, %v281
      %v283 = vpop.f32.mrf.mxu0
      %284 = vdwg.mxu0
      %v285 = vpack.c.bf16 %v282, %v279
      %v287 = vunpack.c.l.b16 %v285
      %v288 = vunpack.c.h.b16 %v285
      %v289 = vpack.c.b16 %v287, %v287
      %v290 = vpack.c.b16 %v288, %v288
      %vm293 = vcmask 60416
      %294 = vst.msk [vmem:[%s218] sm:$0xf] %vm293, %v289
      %295 = vst.msk [vmem:[%s218 + $0x4] sm:$0xf] %vm293, %v290
      %s296 = smul.u32 2, %s19
      %p297 = scmp.lt.s32.totalorder %s18, 1
      %s298 = scalar_select %p297, %s18, 1
      %p299 = scmp.lt.s32.totalorder %s20, 3
      %s300 = scalar_select %p299, %s20, 3
      %p301 = scmp.lt.s32.totalorder %s296, 1
      %s302 = scalar_select %p301, %s296, 1
      %s303 = smul.addr %s300, 2
      %s304 = sadd.s32 %s302, %s303
      %s305 = smul.addr %s298, 8
      %s306 = sadd.s32 %s304, %s305
      %s307 = smul.addr %s306, 4
      %s308 = scalar_lea.vmem %s2, %s307
      // Predicated region
      $region29: #{tpu_custom_call.1} parent=27 // pred_check
        %p309 = pneg %p108
      $region30: #{tpu_custom_call.1} parent=27 // pred_check_branch
        %311 = sbr.rel (%p309) target = $region32
      $region31: #{tpu_custom_call.1} parent=27 // pred_region
        %s312 = smul.u32 2, %s19
      $region32: #{tpu_custom_call.1} parent=27 // pred_fallthru
        _
    $region28: #{tpu_custom_call.1} parent=5 // pred_fallthru
      _
    %p313 = scmp.le.s32.totalorder 2, %s8
    // Predicated region
    $region33: #{tpu_custom_call.1} parent=5 // pred_check
      %p314 = pneg %p313
    $region34: #{tpu_custom_call.1} parent=5 // pred_check_branch
      %316 = sbr.rel (%p314) target = $region36
    $region35: #{tpu_custom_call.1} parent=5 // pred_region
      %s317 = ssub.s32 %s8, 2
      // Predicated region
      $region37: #{tpu_custom_call.1} parent=35 // pred_check
        %p318 = pneg %p114
      $region38: #{tpu_custom_call.1} parent=35 // pred_check_branch
        %320 = sbr.rel (%p318) target = $region40
      $region39: #{tpu_custom_call.1} parent=35 // pred_region
        %s321 = smul.u32 2, %s22
        %p322 = scmp.lt.s32.totalorder %s21, 1
        %s323 = scalar_select %p322, %s21, 1
        %p324 = scmp.lt.s32.totalorder %s23, 3
        %s325 = scalar_select %p324, %s23, 3
        %p326 = scmp.lt.s32.totalorder %s321, 1
        %s327 = scalar_select %p326, %s321, 1
        %s328 = smul.addr %s325, 2
        %s329 = sadd.s32 %s327, %s328
        %s330 = smul.addr %s323, 8
        %s331 = sadd.s32 %s329, %s330
        %s332 = smul.addr %s331, 4
        %s333 = scalar_lea.vmem %s2, %s332
      $region40: #{tpu_custom_call.1} parent=35 // pred_fallthru
        _
    $region36: #{tpu_custom_call.1} parent=5 // pred_fallthru
      _
  $region6: #{tpu_custom_call.1} parent=0 // loop_footer
    %s12 = sadd.s32 1, %s8
  $region7: #{tpu_custom_call.1} parent=0 // loop_footer_branch
    %7 = sbr.rel target = $region3
  $region8: #{tpu_custom_call.1} parent=0 // loop_exit
    _

</llo_original>
